<compile_context>
chip_gen: v6e
topology: v6e:2x2x1
jax: 0.10.0
libtpu: 0.0.40
codegen_flags: <defaults>
</compile_context>

<pallas_src>
import functools

import jax
import jax.numpy as jnp
from jax.experimental import pallas as pl
from jax.experimental.pallas import tpu as pltpu

HIDDEN = 256  # fc1 output width, fixed by the module definition


def _round_up(x, m):
    return ((x + m - 1) // m) * m


def ann_v1_kernel(x_ref, w1_ref, w2_ref, bias_ref, o_ref, *, hidden, n_pad):
    # One batch tile: (TB, In) -> (TB, 256) -> relu -> (TB, n_pad)
    x = x_ref[...]
    bias = bias_ref[...]                       # (2, max(hidden, n_pad)), zero-padded
    b1 = bias[0:1, :hidden]                    # (1, 256)
    b2 = bias[1:2, :n_pad]                     # (1, n_pad)

    h = jnp.dot(x, w1_ref[...], preferred_element_type=jnp.float32) + b1
    h = jnp.maximum(h, 0.0)                    # ReLU
    y = jnp.dot(h, w2_ref[...], preferred_element_type=jnp.float32) + b2
    o_ref[...] = y.astype(o_ref.dtype)


def ann_v1_forward(x, params, *, block_b=256):
    """Pallas forward pass of ANN_V1.  x: (B, n_inputs) float32."""
    B, n_in = x.shape
    w1 = params["w1"]                          # (n_in, 256)
    b1 = params["b1"]                          # (256,)
    w2 = params["w2"]                          # (256, n_out)
    b2 = params["b2"]                          # (n_out,)
    hidden = w1.shape[1]
    n_out = w2.shape[1]

    # ---- lane-dense output: pad the output feature dim to a multiple of 128
    n_pad = max(128, _round_up(n_out, 128))
    w2p = jnp.zeros((hidden, n_pad), jnp.float32).at[:, :n_out].set(w2)

    # ---- pack both bias vectors into one lane-padded (2, cols) slab (1 DMA)
    bias_cols = max(hidden, n_pad)
    bias = jnp.zeros((2, bias_cols), jnp.float32)
    bias = bias.at[0, :hidden].set(b1)
    bias = bias.at[1, :n_out].set(b2)

    # ---- batch tiling: tile size multiple of 8 sublanes, pad B to fit grid
    tb = min(block_b, _round_up(B, 8))
    tb = _round_up(tb, 8)
    b_pad = _round_up(B, tb)
    if b_pad != B:
        x = jnp.pad(x, ((0, b_pad - B), (0, 0)))
    grid = (b_pad // tb,)

    kernel = functools.partial(ann_v1_kernel, hidden=hidden, n_pad=n_pad)

    out = pl.pallas_call(
        kernel,
        out_shape=jax.ShapeDtypeStruct((b_pad, n_pad), jnp.float32),
        grid_spec=pltpu.PrefetchScalarGridSpec(
            num_scalar_prefetch=0,
            grid=grid,
            in_specs=[
                # batch tile of the input
                pl.BlockSpec((tb, n_in), lambda i: (i, 0)),
                # weights & packed bias: constant block index -> stay resident
                pl.BlockSpec((n_in, hidden), lambda i: (0, 0)),
                pl.BlockSpec((hidden, n_pad), lambda i: (0, 0)),
                pl.BlockSpec((2, bias_cols), lambda i: (0, 0)),
            ],
            out_specs=pl.BlockSpec((tb, n_pad), lambda i: (i, 0)),
        ),
        compiler_params=pltpu.CompilerParams(
            dimension_semantics=("parallel",),     # shards batch tiles on v7x's 2 TCs
            vmem_limit_bytes=48 * 1024 * 1024,     # explicit; safe on v5e/v6e/v7x
        ),
    )(x, w1, w2p, bias)

    # strip batch padding and the lane padding of the output features
    return out[:B, :n_out]


def init_params(key, n_inputs, n_outputs):
    """Deterministic synthetic parameters, same shapes/init style as nn.Linear."""
    params = {}
    dims = [("1", n_inputs, HIDDEN), ("2", HIDDEN, n_outputs)]
    for name, fan_in, fan_out in dims:
        key, kw, kb = jax.random.split(key, 3)
        bound = 1.0 / jnp.sqrt(jnp.float32(fan_in))
        # stored as (in, out) == PyTorch weight (out, in) transposed
        params[f"w{name}"] = jax.random.uniform(
            kw, (fan_in, fan_out), jnp.float32, -bound, bound)
        params[f"b{name}"] = jax.random.uniform(
            kb, (fan_out,), jnp.float32, -bound, bound)
    return params


def ann_v1_reference(x, params):
    """Pure-JAX reference of the same forward pass."""
    h = jnp.maximum(x @ params["w1"] + params["b1"], 0.0)
    return h @ params["w2"] + params["b2"]


if __name__ == "__main__":
    key = jax.random.PRNGKey(0)
    key, kx, kp = jax.random.split(key, 3)

    batch, n_inputs, n_outputs = 8, 16, 4
    x = jax.random.normal(kx, (batch, n_inputs), jnp.float32)
    params = init_params(kp, n_inputs, n_outputs)

    out = jax.block_until_ready(ann_v1_forward(x, params))
    ref = ann_v1_reference(x, params)
    assert out.shape == (batch, n_outputs)
    assert jnp.allclose(out, ref, atol=1e-5, rtol=1e-5), "mismatch vs reference"

    # also exercise the gridded / padded-batch path (batch not a tile multiple)
    key, kx2 = jax.random.split(key)
    x2 = jax.random.normal(kx2, (300, n_inputs), jnp.float32)
    out2 = jax.block_until_ready(ann_v1_forward(x2, params, block_b=128))
    ref2 = ann_v1_reference(x2, params)
    assert out2.shape == (300, n_outputs)
    assert jnp.allclose(out2, ref2, atol=1e-5, rtol=1e-5), "mismatch (gridded)"

    print("KERNEL_OK")
</pallas_src>

<mosaic_0001>
module attributes {stable_mosaic.version = 11 : i64} {
  func.func @ann_v1_kernel(%arg0: i32, %arg1: memref<8x16xf32, #tpu.memory_space<vmem>>, %arg2: memref<16x256xf32, #tpu.memory_space<vmem>>, %arg3: memref<256x128xf32, #tpu.memory_space<vmem>>, %arg4: memref<2x256xf32, #tpu.memory_space<vmem>>, %arg5: memref<8x128xf32, #tpu.memory_space<vmem>>) attributes {dimension_semantics = [#tpu.dimension_semantics<parallel>], iteration_bounds = array<i64: 1>, scalar_prefetch = 0 : i64, scratch_operands = 0 : i64, tpu.core_type = #tpu.core_type<tc>, window_params = [{transform_indices = @transform_0, window_bounds = array<i64: 8, 16>}, {pipeline_mode = #tpu.pipeline_mode<synchronous>, transform_indices = @transform_1, window_bounds = array<i64: 16, 256>}, {pipeline_mode = #tpu.pipeline_mode<synchronous>, transform_indices = @transform_2, window_bounds = array<i64: 256, 128>}, {pipeline_mode = #tpu.pipeline_mode<synchronous>, transform_indices = @transform_3, window_bounds = array<i64: 2, 256>}, {transform_indices = @transform_4, window_bounds = array<i64: 8, 128>}]} {
    %c0 = arith.constant 0 : index
    %c0_0 = arith.constant 0 : index
    %0 = vector.load %arg1[%c0, %c0_0] : memref<8x16xf32, #tpu.memory_space<vmem>>, vector<8x16xf32>
    %c0_1 = arith.constant 0 : index
    %c0_2 = arith.constant 0 : index
    %1 = vector.load %arg4[%c0_1, %c0_2] : memref<2x256xf32, #tpu.memory_space<vmem>>, vector<2x256xf32>
    %2 = vector.extract_strided_slice %1 {offsets = [0, 0], sizes = [1, 256], strides = [1, 1]} : vector<2x256xf32> to vector<1x256xf32>
    %3 = vector.extract_strided_slice %1 {offsets = [1, 0], sizes = [1, 128], strides = [1, 1]} : vector<2x256xf32> to vector<1x128xf32>
    %c0_3 = arith.constant 0 : index
    %c0_4 = arith.constant 0 : index
    %4 = vector.load %arg2[%c0_3, %c0_4] : memref<16x256xf32, #tpu.memory_space<vmem>>, vector<16x256xf32>
    %cst = arith.constant dense<0.000000e+00> : vector<8x256xf32>
    %5 = tpu.matmul %0, %4, %cst {dimension_numbers = #tpu.dot_dimension_numbers<[1], [0], [0], [1], [0, 0, 1, 1], [], []>} : vector<8x16xf32>, vector<16x256xf32>, vector<8x256xf32> -> vector<8x256xf32>
    %6 = vector.broadcast %2 : vector<1x256xf32> to vector<8x256xf32>
    %7 = arith.addf %5, %6 : vector<8x256xf32>
    %cst_5 = arith.constant 0.000000e+00 : f32
    %8 = vector.broadcast %cst_5 : f32 to vector<8x256xf32>
    %9 = arith.maximumf %7, %8 : vector<8x256xf32>
    %c0_6 = arith.constant 0 : index
    %c0_7 = arith.constant 0 : index
    %10 = vector.load %arg3[%c0_6, %c0_7] : memref<256x128xf32, #tpu.memory_space<vmem>>, vector<256x128xf32>
    %cst_8 = arith.constant dense<0.000000e+00> : vector<8x128xf32>
    %11 = tpu.matmul %9, %10, %cst_8 {dimension_numbers = #tpu.dot_dimension_numbers<[1], [0], [0], [1], [0, 0, 1, 1], [], []>} : vector<8x256xf32>, vector<256x128xf32>, vector<8x128xf32> -> vector<8x128xf32>
    %12 = vector.broadcast %3 : vector<1x128xf32> to vector<8x128xf32>
    %13 = arith.addf %11, %12 : vector<8x128xf32>
    %c0_9 = arith.constant 0 : index
    %c0_10 = arith.constant 0 : index
    %14 = vector.load %arg5[%c0_9, %c0_10] : memref<8x128xf32, #tpu.memory_space<vmem>>, vector<8x128xf32>
    tpu.vector_store %arg5[%c0_9, %c0_10], %13 {strides = array<i32>} : memref<8x128xf32, #tpu.memory_space<vmem>>, vector<8x128xf32>,
    return
  }
  func.func @transform_0(%arg0: i32) -> (i32, i32) {
    %c0_i32 = arith.constant 0 : i32
    %c0_i32_0 = arith.constant 0 : i32
    return %arg0, %c0_i32 : i32, i32
  }
  func.func @transform_1(%arg0: i32) -> (i32, i32) {
    %c0_i32 = arith.constant 0 : i32
    %c0_i32_0 = arith.constant 0 : i32
    %c0_i32_1 = arith.constant 0 : i32
    return %c0_i32, %c0_i32_0 : i32, i32
  }
  func.func @transform_2(%arg0: i32) -> (i32, i32) {
    %c0_i32 = arith.constant 0 : i32
    %c0_i32_0 = arith.constant 0 : i32
    %c0_i32_1 = arith.constant 0 : i32
    return %c0_i32, %c0_i32_0 : i32, i32
  }
  func.func @transform_3(%arg0: i32) -> (i32, i32) {
    %c0_i32 = arith.constant 0 : i32
    %c0_i32_0 = arith.constant 0 : i32
    %c0_i32_1 = arith.constant 0 : i32
    return %c0_i32, %c0_i32_0 : i32, i32
  }
  func.func @transform_4(%arg0: i32) -> (i32, i32) {
    %c0_i32 = arith.constant 0 : i32
    %c0_i32_0 = arith.constant 0 : i32
    return %arg0, %c0_i32 : i32, i32
  }
}

</mosaic_0001>

<llo_original>
// kernel: tpu_custom_call.1
$region0: #{tpu_custom_call.1}
  #allocation0 [shape = 'u32[]', space=smem, size = 0x4, offset = 0x4, fixed_abs, tag = 'smem constant byte address 0x4 - core index']
  #allocation1 [shape = 'u32[144,128]{1,0:T(1,128)}', space=vmem, size = 0x12000, scoped, tag = 'internal scratch']
  %s0 = inlined_call_operand.hbm [shape: f32[8,16], index: 0, kind: input, shape index: {}]
  %s1 = inlined_call_operand.hbm [shape: f32[16,256], index: 1, kind: input, shape index: {}]
  %s2 = inlined_call_operand.hbm [shape: f32[256,128], index: 2, kind: input, shape index: {}]
  %s3 = inlined_call_operand.vmem [shape: f32[2,256], index: 3, kind: input, shape index: {}]
  %s4 = inlined_call_operand.hbm [shape: f32[8,128], index: 4, kind: output, shape index: {}]
  %s5 = sld [smem:[#allocation0]]
  $region38: #{tpu_custom_call.1} parent=0
    _
  %s7 = ssub.s32 1, %s5
  %s8 = scalar_select 0, %s7, %s5
  $region1: #{tpu_custom_call.1} parent=0
    #allocation2 [shape = 'u8[4096]{0}', space=vmem, size = 0x1000, scoped, tag = 'input window, operand 0, single buffered']
    #allocation3 [shape = 's32[1]{0}', space=sflag, size = 0x4, scoped, tag = 'scoped memory for tpu_custom_call.1']
    #allocation4 [shape = 's32[1]{0}', space=sflag, size = 0x4, scoped, tag = 'scoped memory for tpu_custom_call.1']
    #allocation5 [shape = 'u8[16384]{0}', space=vmem, size = 0x4000, scoped, tag = 'input window, operand 1, single buffered']
    #allocation6 [shape = 's32[1]{0}', space=sflag, size = 0x4, scoped, tag = 'scoped memory for tpu_custom_call.1']
    #allocation7 [shape = 'u8[131072]{0}', space=vmem, size = 0x20000, scoped, tag = 'input window, operand 2, single buffered']
    #allocation8 [shape = 'u8[4096]{0}', space=vmem, size = 0x1000, scoped, tag = 'output window, operand 0, single buffered']
    %9 = vsyncpa [#allocation3], 0
    %10 = vsyncpa [#allocation6], 0
    %11 = vsyncpa [#allocation4], 0
    // Predicated region
    $region2: #{tpu_custom_call.1} parent=1 // pred_check
      _
    $region3: #{tpu_custom_call.1} parent=1 // pred_check_branch
      %13 = sbr.rel (0) target = $region5
    $region4: #{tpu_custom_call.1} parent=1 // pred_region
      %s15 = ssub.s32 128, 128
      %16 = vsyncadd [#allocation3], %s15
      %s18 = sshll.u32 [#allocation2], 4
      %s19 = int_to_ptr.vmem [resolvable:$true] %s18
      %21 = dma.hbm_to_vmem [thread:$0]  %s0, 128, %s19, [#allocation3]
    $region5: #{tpu_custom_call.1} parent=1 // pred_fallthru
      _
    // Predicated region
    $region6: #{tpu_custom_call.1} parent=1 // pred_check
      _
    $region7: #{tpu_custom_call.1} parent=1 // pred_check_branch
      %23 = sbr.rel (0) target = $region9
    $region8: #{tpu_custom_call.1} parent=1 // pred_region
      %s25 = ssub.s32 512, 512
      %26 = vsyncadd [#allocation6], %s25
      %s27 = sshll.u32 [#allocation5], 4
      %s28 = int_to_ptr.vmem [resolvable:$true] %s27
      %33 = dma.hbm_to_vmem [thread:$0]  %s1, 512, %s28, [#allocation6], 256, 256, 16
    $region9: #{tpu_custom_call.1} parent=1 // pred_fallthru
      _
    // Predicated region
    $region10: #{tpu_custom_call.1} parent=1 // pred_check
      _
    $region11: #{tpu_custom_call.1} parent=1 // pred_check_branch
      %35 = sbr.rel (0) target = $region13
    $region12: #{tpu_custom_call.1} parent=1 // pred_region
      %s37 = ssub.s32 4096, 4096
      %38 = vsyncadd [#allocation6], %s37
      %s39 = sshll.u32 [#allocation7], 4
      %s40 = int_to_ptr.vmem [resolvable:$true] %s39
      %45 = dma.hbm_to_vmem [thread:$0]  %s2, 4096, %s40, [#allocation6], 128, 128, 8
    $region13: #{tpu_custom_call.1} parent=1 // pred_fallthru
      _
    // Predicated region
    $region14: #{tpu_custom_call.1} parent=1 // pred_check
      _
    $region15: #{tpu_custom_call.1} parent=1 // pred_check_branch
      %47 = sbr.rel (0) target = $region17
    $region16: #{tpu_custom_call.1} parent=1 // pred_region
      _
    $region17: #{tpu_custom_call.1} parent=1 // pred_fallthru
      _
    // Predicated region
    $region18: #{tpu_custom_call.1} parent=1 // pred_check
      _
    $region19: #{tpu_custom_call.1} parent=1 // pred_check_branch
      %49 = sbr.rel (0) target = $region21
    $region20: #{tpu_custom_call.1} parent=1 // pred_region
      %50 = dma.done [#allocation3], 128
    $region21: #{tpu_custom_call.1} parent=1 // pred_fallthru
      _
    // Predicated region
    $region22: #{tpu_custom_call.1} parent=1 // pred_check
      _
    $region23: #{tpu_custom_call.1} parent=1 // pred_check_branch
      %52 = sbr.rel (0) target = $region25
    $region24: #{tpu_custom_call.1} parent=1 // pred_region
      %53 = dma.done [#allocation6], 512
    $region25: #{tpu_custom_call.1} parent=1 // pred_fallthru
      _
    // Predicated region
    $region26: #{tpu_custom_call.1} parent=1 // pred_check
      _
    $region27: #{tpu_custom_call.1} parent=1 // pred_check_branch
      %55 = sbr.rel (0) target = $region29
    $region28: #{tpu_custom_call.1} parent=1 // pred_region
      %56 = dma.done [#allocation6], 4096
    $region29: #{tpu_custom_call.1} parent=1 // pred_fallthru
      _
    %v57 = vld [vmem:[#allocation2] sm:$0xff]
    %v58 = vld [vmem:[%s3] sm:$0xf]
    %v59 = vld [vmem:[#allocation5] sm:$0xff]
    %v60 = vld [vmem:[#allocation5 + $0x8] sm:$0xff]
    %v61 = vld [vmem:[#allocation5 + $0x10] sm:$0xff]
    %v62 = vld [vmem:[#allocation5 + $0x18] sm:$0xff]
    %v64 = vlaneseq
    %v65 = vshrl.u32 %v64, 7
    %v66 = vsub.s32 0, %v65
    %v67 = vrot.slane %v58, %v66
    %v68 = vlaneseq
    %v69 = vshrl.u32 %v68, 7
    %v70 = vsub.s32 2, %v69
    %v71 = vrot.slane %v58, %v70
    %v74 = vlaneseq
    %v75 = vshrl.u32 %v74, 7
    %v76 = vsub.s32 0, %v75
    %v77 = vrot.slane %v67, %v76
    %v78 = vlaneseq
    %v79 = vshrl.u32 %v78, 7
    %v80 = vsub.s32 0, %v79
    %v81 = vrot.slane %v71, %v80
    %vm82 = vcmask 130048
    %v84 = vsel %vm82, %v57, 0
    %86 = vmatprep.subr.mxu0 0.0
    %87 = vmatpush1.msra.mxu0 0.0
    %88 = vmatprep.subr.mxu0 0.0
    %89 = vmatpush1.msra.mxu0 0.0
    %90 = vmatprep.subr.mxu0 0.0
    %91 = vmatpush1.msra.mxu0 0.0
    %92 = vmatprep.subr.mxu0 0.0
    %93 = vmatpush1.msra.mxu0 0.0
    %94 = vmatprep.subr.mxu0 0.0
    %95 = vmatpush1.msra.mxu0 0.0
    %96 = vmatprep.subr.mxu0 0.0
    %97 = vmatpush1.msra.mxu0 0.0
    %98 = vmatprep.subr.mxu0 0.0
    %99 = vmatpush1.msra.mxu0 0.0
    %100 = vmatprep.subr.mxu0 0.0
    %101 = vmatpush1.msra.mxu0 0.0
    %102 = vmatprep.subr.mxu0 0.0
    %103 = vmatpush1.msra.mxu0 0.0
    %104 = vmatprep.subr.mxu0 0.0
    %105 = vmatpush1.msra.mxu0 0.0
    %106 = vmatprep.subr.mxu0 0.0
    %107 = vmatpush1.msra.mxu0 0.0
    %108 = vmatprep.subr.mxu0 0.0
    %109 = vmatpush1.msra.mxu0 0.0
    %110 = vmatprep.subr.mxu0 0.0
    %111 = vmatpush1.msra.mxu0 0.0
    %112 = vmatprep.subr.mxu0 0.0
    %113 = vmatpush1.msra.mxu0 0.0
    %114 = vmatprep.subr.mxu0 %v62
    %115 = vmatpush1.msra.mxu0 %v61
    %116 = vmatprep.subr.mxu0 %v60
    %117 = vmatpush1.msra.mxu0 %v59
    %118 = vmatprep.subr.mxu0 0.0
    %119 = vmatpush2.msra.mxu0 0.0
    %120 = vmatprep.subr.mxu0 0.0
    %121 = vmatpush2.msra.mxu0 0.0
    %122 = vmatprep.subr.mxu0 0.0
    %123 = vmatpush2.msra.mxu0 0.0
    %124 = vmatprep.subr.mxu0 0.0
    %125 = vmatpush2.msra.mxu0 0.0
    %126 = vmatprep.subr.mxu0 0.0
    %127 = vmatpush2.msra.mxu0 0.0
    %128 = vmatprep.subr.mxu0 0.0
    %129 = vmatpush2.msra.mxu0 0.0
    %130 = vmatprep.subr.mxu0 0.0
    %131 = vmatpush2.msra.mxu0 0.0
    %132 = vmatprep.subr.mxu0 0.0
    %133 = vmatpush2.msra.mxu0 0.0
    %134 = vmatprep.subr.mxu0 0.0
    %135 = vmatpush2.msra.mxu0 0.0
    %136 = vmatprep.subr.mxu0 0.0
    %137 = vmatpush2.msra.mxu0 0.0
    %138 = vmatprep.subr.mxu0 0.0
    %139 = vmatpush2.msra.mxu0 0.0
    %140 = vmatprep.subr.mxu0 0.0
    %141 = vmatpush2.msra.mxu0 0.0
    %142 = vmatprep.subr.mxu0 0.0
    %143 = vmatpush2.msra.mxu0 0.0
    %144 = vmatprep.subr.mxu0 0.0
    %145 = vmatpush2.msra.mxu0 0.0
    %146 = vmatprep.subr.mxu0 0.0
    %147 = vmatpush2.msra.mxu0 0.0
    %148 = vmatprep.subr.mxu0 0.0
    %149 = vmatpush2.msra.mxu0 0.0
    %150 = vmatprep.mubr.f32.mxu0 0.0
    %151 = vmatmul.mubr.f32.gmra.mxu0 %v84
    %v152 = vpop.f32.mrf.mxu0
    %v153 = vadd.f32 %v77, %v152
    %v154 = vpop.f32.mrf.mxu0
    %v155 = vadd.f32 %v81, %v154
    %156 = vdwg.mxu0
    %v157 = vmax.f32 %v153, 0.0
    %v158 = vmax.f32 %v155, 0.0
    %v159 = vld [vmem:[#allocation7] sm:$0xff]
    %v160 = vld [vmem:[#allocation7 + $0x8] sm:$0xff]
    %v161 = vld [vmem:[#allocation7 + $0x10] sm:$0xff]
    %v162 = vld [vmem:[#allocation7 + $0x18] sm:$0xff]
    %v163 = vld [vmem:[#allocation7 + $0x20] sm:$0xff]
    %v164 = vld [vmem:[#allocation7 + $0x28] sm:$0xff]
    %v165 = vld [vmem:[#allocation7 + $0x30] sm:$0xff]
    %v166 = vld [vmem:[#allocation7 + $0x38] sm:$0xff]
    %v167 = vld [vmem:[#allocation7 + $0x40] sm:$0xff]
    %v168 = vld [vmem:[#allocation7 + $0x48] sm:$0xff]
    %v169 = vld [vmem:[#allocation7 + $0x50] sm:$0xff]
    %v170 = vld [vmem:[#allocation7 + $0x58] sm:$0xff]
    %v171 = vld [vmem:[#allocation7 + $0x60] sm:$0xff]
    %v172 = vld [vmem:[#allocation7 + $0x68] sm:$0xff]
    %v173 = vld [vmem:[#allocation7 + $0x70] sm:$0xff]
    %v174 = vld [vmem:[#allocation7 + $0x78] sm:$0xff]
    %v175 = vld [vmem:[#allocation7 + $0x80] sm:$0xff]
    %v176 = vld [vmem:[#allocation7 + $0x88] sm:$0xff]
    %v177 = vld [vmem:[#allocation7 + $0x90] sm:$0xff]
    %v178 = vld [vmem:[#allocation7 + $0x98] sm:$0xff]
    %v179 = vld [vmem:[#allocation7 + $0xa0] sm:$0xff]
    %v180 = vld [vmem:[#allocation7 + $0xa8] sm:$0xff]
    %v181 = vld [vmem:[#allocation7 + $0xb0] sm:$0xff]
    %v182 = vld [vmem:[#allocation7 + $0xb8] sm:$0xff]
    %v183 = vld [vmem:[#allocation7 + $0xc0] sm:$0xff]
    %v184 = vld [vmem:[#allocation7 + $0xc8] sm:$0xff]
    %v185 = vld [vmem:[#allocation7 + $0xd0] sm:$0xff]
    %v186 = vld [vmem:[#allocation7 + $0xd8] sm:$0xff]
    %v187 = vld [vmem:[#allocation7 + $0xe0] sm:$0xff]
    %v188 = vld [vmem:[#allocation7 + $0xe8] sm:$0xff]
    %v189 = vld [vmem:[#allocation7 + $0xf0] sm:$0xff]
    %v190 = vld [vmem:[#allocation7 + $0xf8] sm:$0xff]
    %v191 = vlaneseq
    %v192 = vshrl.u32 %v191, 7
    %v193 = vsub.s32 1, %v192
    %v194 = vrot.slane %v58, %v193
    %195 = vmatprep.subr.mxu0 0.0
    %196 = vmatpush1.msra.mxu0 %v174
    %197 = vmatprep.subr.mxu0 0.0
    %198 = vmatpush1.msra.mxu0 %v173
    %199 = vmatprep.subr.mxu0 0.0
    %200 = vmatpush1.msra.mxu0 %v172
    %201 = vmatprep.subr.mxu0 0.0
    %202 = vmatpush1.msra.mxu0 %v171
    %203 = vmatprep.subr.mxu0 0.0
    %204 = vmatpush1.msra.mxu0 %v170
    %205 = vmatprep.subr.mxu0 0.0
    %206 = vmatpush1.msra.mxu0 %v169
    %207 = vmatprep.subr.mxu0 0.0
    %208 = vmatpush1.msra.mxu0 %v168
    %209 = vmatprep.subr.mxu0 0.0
    %210 = vmatpush1.msra.mxu0 %v167
    %211 = vmatprep.subr.mxu0 0.0
    %212 = vmatpush1.msra.mxu0 %v166
    %213 = vmatprep.subr.mxu0 0.0
    %214 = vmatpush1.msra.mxu0 %v165
    %215 = vmatprep.subr.mxu0 0.0
    %216 = vmatpush1.msra.mxu0 %v164
    %217 = vmatprep.subr.mxu0 0.0
    %218 = vmatpush1.msra.mxu0 %v163
    %219 = vmatprep.subr.mxu0 0.0
    %220 = vmatpush1.msra.mxu0 %v162
    %221 = vmatprep.subr.mxu0 0.0
    %222 = vmatpush1.msra.mxu0 %v161
    %223 = vmatprep.subr.mxu0 0.0
    %224 = vmatpush1.msra.mxu0 %v160
    %225 = vmatprep.subr.mxu0 0.0
    %226 = vmatpush1.msra.mxu0 %v159
    %227 = vmatprep.subr.mxu0 0.0
    %228 = vmatpush2.msra.mxu0 %v190
    %229 = vmatprep.subr.mxu0 0.0
    %230 = vmatpush2.msra.mxu0 %v189
    %231 = vmatprep.subr.mxu0 0.0
    %232 = vmatpush2.msra.mxu0 %v188
    %233 = vmatprep.subr.mxu0 0.0
    %234 = vmatpush2.msra.mxu0 %v187
    %235 = vmatprep.subr.mxu0 0.0
    %236 = vmatpush2.msra.mxu0 %v186
    %237 = vmatprep.subr.mxu0 0.0
    %238 = vmatpush2.msra.mxu0 %v185
    %239 = vmatprep.subr.mxu0 0.0
    %240 = vmatpush2.msra.mxu0 %v184
    %241 = vmatprep.subr.mxu0 0.0
    %242 = vmatpush2.msra.mxu0 %v183
    %243 = vmatprep.subr.mxu0 0.0
    %244 = vmatpush2.msra.mxu0 %v182
    %245 = vmatprep.subr.mxu0 0.0
    %246 = vmatpush2.msra.mxu0 %v181
    %247 = vmatprep.subr.mxu0 0.0
    %248 = vmatpush2.msra.mxu0 %v180
    %249 = vmatprep.subr.mxu0 0.0
    %250 = vmatpush2.msra.mxu0 %v179
    %251 = vmatprep.subr.mxu0 0.0
    %252 = vmatpush2.msra.mxu0 %v178
    %253 = vmatprep.subr.mxu0 0.0
    %254 = vmatpush2.msra.mxu0 %v177
    %255 = vmatprep.subr.mxu0 0.0
    %256 = vmatpush2.msra.mxu0 %v176
    %257 = vmatprep.subr.mxu0 0.0
    %258 = vmatpush2.msra.mxu0 %v175
    %259 = vmatprep.mubr.f32.mxu0 %v158
    %260 = vmatmul.mubr.f32.gmra.mxu0 %v157
    %v261 = vpop.f32.mrf.mxu0
    %v262 = vadd.f32 %v194, %v261
    %v263 = vpop.f32.mrf.mxu0
    %264 = vdwg.mxu0
    %265 = vst [vmem:[#allocation8] sm:$0xff] %v262
    // Predicated region
    $region30: #{tpu_custom_call.1} parent=1 // pred_check
      _
    $region31: #{tpu_custom_call.1} parent=1 // pred_check_branch
      %267 = sbr.rel (0) target = $region33
    $region32: #{tpu_custom_call.1} parent=1 // pred_region
      %s269 = ssub.s32 128, 128
      %270 = vsyncadd [#allocation4], %s269
      %s272 = sshll.u32 [#allocation8], 4
      %s273 = int_to_ptr.vmem [resolvable:$true] %s272
      %275 = dma.vmem_to_hbm [thread:$0]  %s273, 128, %s4, [#allocation4]
    $region33: #{tpu_custom_call.1} parent=1 // pred_fallthru
      _
    // Predicated region
    $region34: #{tpu_custom_call.1} parent=1 // pred_check
      _
    $region35: #{tpu_custom_call.1} parent=1 // pred_check_branch
      %277 = sbr.rel (0) target = $region37
    $region36: #{tpu_custom_call.1} parent=1 // pred_region
      %278 = dma.done [#allocation4], 128
    $region37: #{tpu_custom_call.1} parent=1 // pred_fallthru
      _
    %279 = vsyncpa [#allocation3], 1
    %280 = vsyncpa [#allocation6], 1
    %281 = vsyncpa [#allocation4], 1

</llo_original>
